<compile_context>
chip_gen: v5e
topology: v5e:2x2
jax: 0.10.0
libtpu: 0.0.40
codegen_flags: <defaults>
</compile_context>

<pallas_src>
import math

import jax
import jax.numpy as jnp
import numpy as np
from jax.experimental import pallas as pl
from jax.experimental.pallas import tpu as pltpu

LOG_2PI = math.log(2.0 * math.pi)
SELU_ALPHA = 1.6732632423543772
SELU_SCALE = 1.0507009873554805


def _elu(x):
    return jnp.where(x > 0, x, jnp.exp(x) - 1.0)


def _selu_noscale(x):
    # SELU with the outer 1.0507 scale folded into the downstream weights (cw2/cw3/cw4).
    return jnp.where(x > 0, x, SELU_ALPHA * (jnp.exp(x) - 1.0))


def _round_up(x, m):
    return ((x + m - 1) // m) * m


def actor_critic_kernel(
    # batch-tiled input: [obs | act] packed along lanes
    xin_ref,
    # resident small inputs / weights (constant index_map -> stay in VMEM)
    invs2_ref,
    aw1_ref, ab1_ref, aw2_ref, ab2_ref, aw3_ref, ab3_ref,
    cw1_ref, cb1_ref, cw2_ref, cb2_ref, cw3_ref, cb3_ref, cw4_ref, cb4_ref,
    # single packed output slab: [mean(A) | -0.5*quad(1) | value(1)]
    out_ref,
):
    A = invs2_ref.shape[1]
    obs_dim = xin_ref.shape[1] - A

    x = xin_ref[...]
    obs = x[:, :obs_dim]
    act = x[:, obs_dim:obs_dim + A]

    # ---------------- actor MLP (ELU, f32 to keep distribution stats tight) ----------------
    h = _elu(jnp.dot(obs, aw1_ref[...], preferred_element_type=jnp.float32) + ab1_ref[...])
    h = _elu(jnp.dot(h, aw2_ref[...], preferred_element_type=jnp.float32) + ab2_ref[...])
    mean = jnp.dot(h, aw3_ref[...], preferred_element_type=jnp.float32) + ab3_ref[...]

    # ------------- MultivariateNormal quadratic term -------------
    # scale_tril = diag(exp(log_std)^2) => covariance = diag(exp(log_std)^4)
    # inv_sigma2 = exp(-2*log_std) is precomputed (1, A); constants added in the wrapper.
    z = (act - mean) * invs2_ref[...]
    lp_partial = -0.5 * jnp.sum(z * z, axis=-1, keepdims=True)      # (TB, 1)

    # ----- critic MLP: bf16 SELU (scale folded into weights), f32 accumulate + f32 bias -----
    c = jnp.dot(obs.astype(jnp.bfloat16), cw1_ref[...],
                preferred_element_type=jnp.float32) + cb1_ref[...]
    c = _selu_noscale(c.astype(jnp.bfloat16))
    c = jnp.dot(c, cw2_ref[...], preferred_element_type=jnp.float32) + cb2_ref[...]
    c = _selu_noscale(c.astype(jnp.bfloat16))
    c = jnp.dot(c, cw3_ref[...], preferred_element_type=jnp.float32) + cb3_ref[...]
    c = _selu_noscale(c.astype(jnp.bfloat16))
    value = jnp.dot(c, cw4_ref[...], preferred_element_type=jnp.float32) + cb4_ref[...]  # (TB,1)

    # ---------------- single packed output write (one wide store per vreg row) ----------------
    out_ref[...] = jnp.concatenate([mean, lp_partial, value], axis=-1)


_WEIGHT_KEYS = ("aw1", "ab1", "aw2", "ab2", "aw3", "ab3",
                "cw1", "cb1", "cw2", "cb2", "cw3", "cb3", "cw4", "cb4")


def evaluate(observations, actions, params, *, block_batch=1024):
    """Pallas-fused equivalent of CustomActorCritic.evaluate (asymmetric=False)."""
    B, obs_dim = observations.shape
    A = actions.shape[1]
    in_w = obs_dim + A
    out_w = A + 2

    # Batch tile: big enough to hide per-step overhead; rounded to 16 (bf16 sublane pack).
    TB = min(block_batch, _round_up(B, 16))
    if B >= 32:
        # Guarantee >= 2 grid steps so dimension_semantics=("parallel",) can split tiles
        # across v7x's two TensorCores (no effect on v5e/v6e correctness or perf).
        TB = min(TB, _round_up((B + 1) // 2, 16))
    grid = (pl.cdiv(B, TB),)

    log_std = params["log_std"]                     # (1, A) f32
    inv_sigma2 = jnp.exp(-2.0 * log_std)            # (1, A) — multiply instead of divide

    # One lane-packed batch input: [obs | act]; halves input VMEM / DMA streams.
    xin = jnp.concatenate([observations, actions], axis=-1)

    def batch_spec(width):
        return pl.BlockSpec((TB, width), lambda i: (i, 0))

    def resident(shape):
        # Constant block index -> weight stays in VMEM across all grid steps.
        return pl.BlockSpec(shape, lambda i: (0, 0))

    weights = [params[k] for k in _WEIGHT_KEYS]
    in_specs = ([batch_spec(in_w), resident(inv_sigma2.shape)]
                + [resident(tuple(w.shape)) for w in weights])

    # Advisory cost estimate (lets XLA schedule the surrounding wrapper ops around the call).
    ah = params["aw1"].shape[1]
    ch = params["cw1"].shape[1]
    flops_per_row = (2 * (obs_dim * ah + ah * ah + ah * A)
                     + 2 * (obs_dim * ch + 2 * ch * ch + ch))
    trans_per_row = 2 * ah + 3 * ch
    weight_bytes = sum(int(np.prod(w.shape)) * int(w.dtype.itemsize) for w in weights)
    cost = pl.CostEstimate(
        flops=int(B * flops_per_row),
        transcendentals=int(B * trans_per_row),
        bytes_accessed=int(B * (in_w + out_w) * 4 + weight_bytes),
    )

    slab = pl.pallas_call(
        actor_critic_kernel,
        out_shape=jax.ShapeDtypeStruct((B, out_w), jnp.float32),
        grid=grid,
        in_specs=in_specs,
        out_specs=batch_spec(out_w),
        compiler_params=pltpu.CompilerParams(
            dimension_semantics=("parallel",)),     # v7x: shard batch tiles over 2 TCs
        cost_estimate=cost,
    )(xin, inv_sigma2, *weights)

    mean = slab[:, 0:A]
    lp_partial = slab[:, A]
    value = slab[:, A + 1:A + 2]

    # Batch-independent pieces (pure constants / broadcasts) stay in the wrapper.
    half_logdet = jnp.sum(2.0 * log_std)            # 0.5 * log|Sigma|, Sigma = diag(sigma^4)
    kf = float(A)
    logprob = lp_partial - half_logdet - 0.5 * kf * LOG_2PI
    entropy = jnp.full((B,), 0.5 * kf * (1.0 + LOG_2PI), dtype=jnp.float32) + half_logdet
    logstd_rep = jnp.broadcast_to(log_std, (B, A))

    # match PyTorch return shapes: log_prob [B], entropy [B], value [B,1], mean [B,A], log_std [B,A]
    return logprob, entropy, value, mean, logstd_rep


# ------------------------- deterministic parameter init -------------------------

def _orthogonal(key, shape, gain):
    """torch.nn.init.orthogonal_ equivalent (for a 2-D [out, in] weight)."""
    rows, cols = shape
    a = jax.random.normal(key, (max(rows, cols), min(rows, cols)), dtype=jnp.float32)
    q, r = jnp.linalg.qr(a)
    q = q * jnp.sign(jnp.diagonal(r))
    if rows < cols:
        q = q.T
    return gain * q[:rows, :cols]


def make_params(key, obs_dim, act_dim, actor_hidden=32, critic_hidden=(256, 256, 256),
                initial_std=1.0):
    ks = jax.random.split(key, 16)
    p = {}
    # synthetic actor (ELU MLP), stored as [in, out], f32
    dims_a = [obs_dim, actor_hidden, actor_hidden, act_dim]
    for i in range(3):
        w = 0.1 * jax.random.normal(ks[i], (dims_a[i], dims_a[i + 1]), dtype=jnp.float32)
        b = 0.01 * jax.random.normal(ks[3 + i], (1, dims_a[i + 1]), dtype=jnp.float32)
        p[f"aw{i+1}"] = w
        p[f"ab{i+1}"] = b
    # critic: orthogonal init with gains [sqrt(2), sqrt(2), sqrt(2), 1.0]; weights stored bf16.
    # SELU_SCALE is folded ONCE here into cw2/cw3/cw4 (the weights downstream of a SELU);
    # the kernel + evaluate_ref both use the scale-free SELU, so results stay consistent.
    dims_c = [obs_dim, *critic_hidden, 1]
    gains = [math.sqrt(2.0)] * len(critic_hidden) + [1.0]
    for i in range(4):
        w_oi = _orthogonal(ks[6 + i], (dims_c[i + 1], dims_c[i]), gains[i])   # [out, in]
        w_io = w_oi.T                                                          # [in, out]
        if i > 0:
            w_io = SELU_SCALE * w_io
        p[f"cw{i+1}"] = jnp.asarray(w_io, dtype=jnp.bfloat16)
        p[f"cb{i+1}"] = jnp.zeros((1, dims_c[i + 1]), dtype=jnp.float32)
    # log_std = log(initial_std) * ones(actions_shape)
    p["log_std"] = jnp.full((1, act_dim), math.log(initial_std), dtype=jnp.float32)
    return p


# ------------------------------ pure-JAX reference ------------------------------
# Mirrors the kernel's precision choices exactly (f32 actor; bf16 SELU critic with
# scale folded into the weights and f32 accumulation).

def evaluate_ref(obs, act, p):
    h = _elu(obs @ p["aw1"] + p["ab1"])
    h = _elu(h @ p["aw2"] + p["ab2"])
    mean = h @ p["aw3"] + p["ab3"]

    log_std = p["log_std"]
    inv_sigma2 = jnp.exp(-2.0 * log_std)
    z = (act - mean) * inv_sigma2
    quad = jnp.sum(z * z, axis=-1)
    half_logdet = jnp.sum(2.0 * log_std)
    k = act.shape[1]
    logprob = -0.5 * quad - half_logdet - 0.5 * k * LOG_2PI
    entropy = jnp.full((obs.shape[0],), 0.5 * k * (1.0 + LOG_2PI)) + half_logdet

    c = jnp.dot(obs.astype(jnp.bfloat16), p["cw1"],
                preferred_element_type=jnp.float32) + p["cb1"]
    c = _selu_noscale(c.astype(jnp.bfloat16))
    c = jnp.dot(c, p["cw2"], preferred_element_type=jnp.float32) + p["cb2"]
    c = _selu_noscale(c.astype(jnp.bfloat16))
    c = jnp.dot(c, p["cw3"], preferred_element_type=jnp.float32) + p["cb3"]
    c = _selu_noscale(c.astype(jnp.bfloat16))
    value = jnp.dot(c, p["cw4"], preferred_element_type=jnp.float32) + p["cb4"]
    return logprob, entropy, value, mean, jnp.broadcast_to(log_std, (obs.shape[0], k))


if __name__ == "__main__":
    B, OBS_DIM, ACT_DIM = 16, 8, 2

    key = jax.random.PRNGKey(0)
    k_obs, k_act, k_par = jax.random.split(key, 3)
    observations = jax.random.normal(k_obs, (B, OBS_DIM), dtype=jnp.float32)
    actions = jax.random.normal(k_act, (B, ACT_DIM), dtype=jnp.float32)
    params = make_params(k_par, OBS_DIM, ACT_DIM, initial_std=1.0)

    out = evaluate(observations, actions, params)
    out = jax.block_until_ready(out)

    ref = evaluate_ref(observations, actions, params)
    tols = [2e-3, 2e-3, 2e-2, 2e-3, 2e-3]   # value uses bf16 MXU/activation path -> slightly looser
    for a, b, t in zip(out, ref, tols):
        np.testing.assert_allclose(np.asarray(a), np.asarray(b), rtol=t, atol=t)

    print("KERNEL_OK")
</pallas_src>

<mosaic_0001>
module attributes {stable_mosaic.version = 11 : i64} {
  func.func @actor_critic_kernel(%arg0: i32, %arg1: memref<16x10xf32, #tpu.memory_space<vmem>>, %arg2: memref<1x2xf32, #tpu.memory_space<vmem>>, %arg3: memref<8x32xf32, #tpu.memory_space<vmem>>, %arg4: memref<1x32xf32, #tpu.memory_space<vmem>>, %arg5: memref<32x32xf32, #tpu.memory_space<vmem>>, %arg6: memref<1x32xf32, #tpu.memory_space<vmem>>, %arg7: memref<32x2xf32, #tpu.memory_space<vmem>>, %arg8: memref<1x2xf32, #tpu.memory_space<vmem>>, %arg9: memref<8x256xbf16, #tpu.memory_space<vmem>>, %arg10: memref<1x256xf32, #tpu.memory_space<vmem>>, %arg11: memref<256x256xbf16, #tpu.memory_space<vmem>>, %arg12: memref<1x256xf32, #tpu.memory_space<vmem>>, %arg13: memref<256x256xbf16, #tpu.memory_space<vmem>>, %arg14: memref<1x256xf32, #tpu.memory_space<vmem>>, %arg15: memref<256x1xbf16, #tpu.memory_space<vmem>>, %arg16: memref<1x1xf32, #tpu.memory_space<vmem>>, %arg17: memref<16x4xf32, #tpu.memory_space<vmem>>) attributes {dimension_semantics = [#tpu.dimension_semantics<parallel>], iteration_bounds = array<i64: 1>, scalar_prefetch = 0 : i64, scratch_operands = 0 : i64, tpu.core_type = #tpu.core_type<tc>, window_params = [{transform_indices = @transform_0, window_bounds = array<i64: 16, 10>}, {pipeline_mode = #tpu.pipeline_mode<synchronous>, transform_indices = @transform_1, window_bounds = array<i64: 1, 2>}, {pipeline_mode = #tpu.pipeline_mode<synchronous>, transform_indices = @transform_2, window_bounds = array<i64: 8, 32>}, {pipeline_mode = #tpu.pipeline_mode<synchronous>, transform_indices = @transform_3, window_bounds = array<i64: 1, 32>}, {pipeline_mode = #tpu.pipeline_mode<synchronous>, transform_indices = @transform_4, window_bounds = array<i64: 32, 32>}, {pipeline_mode = #tpu.pipeline_mode<synchronous>, transform_indices = @transform_5, window_bounds = array<i64: 1, 32>}, {pipeline_mode = #tpu.pipeline_mode<synchronous>, transform_indices = @transform_6, window_bounds = array<i64: 32, 2>}, {pipeline_mode = #tpu.pipeline_mode<synchronous>, transform_indices = @transform_7, window_bounds = array<i64: 1, 2>}, {pipeline_mode = #tpu.pipeline_mode<synchronous>, transform_indices = @transform_8, window_bounds = array<i64: 8, 256>}, {pipeline_mode = #tpu.pipeline_mode<synchronous>, transform_indices = @transform_9, window_bounds = array<i64: 1, 256>}, {pipeline_mode = #tpu.pipeline_mode<synchronous>, transform_indices = @transform_10, window_bounds = array<i64: 256, 256>}, {pipeline_mode = #tpu.pipeline_mode<synchronous>, transform_indices = @transform_11, window_bounds = array<i64: 1, 256>}, {pipeline_mode = #tpu.pipeline_mode<synchronous>, transform_indices = @transform_12, window_bounds = array<i64: 256, 256>}, {pipeline_mode = #tpu.pipeline_mode<synchronous>, transform_indices = @transform_13, window_bounds = array<i64: 1, 256>}, {pipeline_mode = #tpu.pipeline_mode<synchronous>, transform_indices = @transform_14, window_bounds = array<i64: 256, 1>}, {pipeline_mode = #tpu.pipeline_mode<synchronous>, transform_indices = @transform_15, window_bounds = array<i64: 1, 1>}, {transform_indices = @transform_16, window_bounds = array<i64: 16, 4>}]} {
    %c0 = arith.constant 0 : index
    %c0_0 = arith.constant 0 : index
    %0 = vector.load %arg1[%c0, %c0_0] : memref<16x10xf32, #tpu.memory_space<vmem>>, vector<16x10xf32>
    %1 = vector.extract_strided_slice %0 {offsets = [0, 0], sizes = [16, 8], strides = [1, 1]} : vector<16x10xf32> to vector<16x8xf32>
    %2 = vector.extract_strided_slice %0 {offsets = [0, 8], sizes = [16, 2], strides = [1, 1]} : vector<16x10xf32> to vector<16x2xf32>
    %c0_1 = arith.constant 0 : index
    %c0_2 = arith.constant 0 : index
    %3 = vector.load %arg3[%c0_1, %c0_2] : memref<8x32xf32, #tpu.memory_space<vmem>>, vector<8x32xf32>
    %cst = arith.constant dense<0.000000e+00> : vector<16x32xf32>
    %4 = tpu.matmul %1, %3, %cst {dimension_numbers = #tpu.dot_dimension_numbers<[1], [0], [0], [1], [0, 0, 1, 1], [], []>} : vector<16x8xf32>, vector<8x32xf32>, vector<16x32xf32> -> vector<16x32xf32>
    %c0_3 = arith.constant 0 : index
    %c0_4 = arith.constant 0 : index
    %5 = vector.load %arg4[%c0_3, %c0_4] : memref<1x32xf32, #tpu.memory_space<vmem>>, vector<1x32xf32>
    %6 = vector.broadcast %5 : vector<1x32xf32> to vector<16x32xf32>
    %7 = arith.addf %4, %6 : vector<16x32xf32>
    %cst_5 = arith.constant 0.000000e+00 : f32
    %8 = vector.broadcast %cst_5 : f32 to vector<16x32xf32>
    %9 = arith.cmpf ogt, %7, %8 : vector<16x32xf32>
    %10 = math.exp %7 : vector<16x32xf32>
    %cst_6 = arith.constant 1.000000e+00 : f32
    %11 = vector.broadcast %cst_6 : f32 to vector<16x32xf32>
    %12 = arith.subf %10, %11 : vector<16x32xf32>
    %13 = arith.select %9, %7, %12 : vector<16x32xi1>, vector<16x32xf32>
    %c0_7 = arith.constant 0 : index
    %c0_8 = arith.constant 0 : index
    %14 = vector.load %arg5[%c0_7, %c0_8] : memref<32x32xf32, #tpu.memory_space<vmem>>, vector<32x32xf32>
    %cst_9 = arith.constant dense<0.000000e+00> : vector<16x32xf32>
    %15 = tpu.matmul %13, %14, %cst_9 {dimension_numbers = #tpu.dot_dimension_numbers<[1], [0], [0], [1], [0, 0, 1, 1], [], []>} : vector<16x32xf32>, vector<32x32xf32>, vector<16x32xf32> -> vector<16x32xf32>
    %c0_10 = arith.constant 0 : index
    %c0_11 = arith.constant 0 : index
    %16 = vector.load %arg6[%c0_10, %c0_11] : memref<1x32xf32, #tpu.memory_space<vmem>>, vector<1x32xf32>
    %17 = vector.broadcast %16 : vector<1x32xf32> to vector<16x32xf32>
    %18 = arith.addf %15, %17 : vector<16x32xf32>
    %cst_12 = arith.constant 0.000000e+00 : f32
    %19 = vector.broadcast %cst_12 : f32 to vector<16x32xf32>
    %20 = arith.cmpf ogt, %18, %19 : vector<16x32xf32>
    %21 = math.exp %18 : vector<16x32xf32>
    %cst_13 = arith.constant 1.000000e+00 : f32
    %22 = vector.broadcast %cst_13 : f32 to vector<16x32xf32>
    %23 = arith.subf %21, %22 : vector<16x32xf32>
    %24 = arith.select %20, %18, %23 : vector<16x32xi1>, vector<16x32xf32>
    %c0_14 = arith.constant 0 : index
    %c0_15 = arith.constant 0 : index
    %25 = vector.load %arg7[%c0_14, %c0_15] : memref<32x2xf32, #tpu.memory_space<vmem>>, vector<32x2xf32>
    %cst_16 = arith.constant dense<0.000000e+00> : vector<16x2xf32>
    %26 = tpu.matmul %24, %25, %cst_16 {dimension_numbers = #tpu.dot_dimension_numbers<[1], [0], [0], [1], [0, 0, 1, 1], [], []>} : vector<16x32xf32>, vector<32x2xf32>, vector<16x2xf32> -> vector<16x2xf32>
    %c0_17 = arith.constant 0 : index
    %c0_18 = arith.constant 0 : index
    %27 = vector.load %arg8[%c0_17, %c0_18] : memref<1x2xf32, #tpu.memory_space<vmem>>, vector<1x2xf32>
    %28 = vector.broadcast %27 : vector<1x2xf32> to vector<16x2xf32>
    %29 = arith.addf %26, %28 : vector<16x2xf32>
    %30 = arith.subf %2, %29 : vector<16x2xf32>
    %c0_19 = arith.constant 0 : index
    %c0_20 = arith.constant 0 : index
    %31 = vector.load %arg2[%c0_19, %c0_20] : memref<1x2xf32, #tpu.memory_space<vmem>>, vector<1x2xf32>
    %32 = vector.broadcast %31 : vector<1x2xf32> to vector<16x2xf32>
    %33 = arith.mulf %30, %32 : vector<16x2xf32>
    %34 = arith.mulf %33, %33 : vector<16x2xf32>
    %cst_21 = arith.constant dense<0.000000e+00> : vector<16xf32>
    %35 = vector.multi_reduction <add>, %34, %cst_21 [1] : vector<16x2xf32> to vector<16xf32>
    %36 = vector.shape_cast %35 : vector<16xf32> to vector<16x1xf32>
    %cst_22 = arith.constant -5.000000e-01 : f32
    %37 = vector.broadcast %cst_22 : f32 to vector<16x1xf32>
    %38 = arith.mulf %37, %36 : vector<16x1xf32>
    %39 = arith.truncf %1 : vector<16x8xf32> to vector<16x8xbf16>
    %c0_23 = arith.constant 0 : index
    %c0_24 = arith.constant 0 : index
    %40 = vector.load %arg9[%c0_23, %c0_24] : memref<8x256xbf16, #tpu.memory_space<vmem>>, vector<8x256xbf16>
    %cst_25 = arith.constant dense<0.000000e+00> : vector<16x256xf32>
    %41 = tpu.matmul %39, %40, %cst_25 {dimension_numbers = #tpu.dot_dimension_numbers<[1], [0], [0], [1], [0, 0, 1, 1], [], []>} : vector<16x8xbf16>, vector<8x256xbf16>, vector<16x256xf32> -> vector<16x256xf32>
    %c0_26 = arith.constant 0 : index
    %c0_27 = arith.constant 0 : index
    %42 = vector.load %arg10[%c0_26, %c0_27] : memref<1x256xf32, #tpu.memory_space<vmem>>, vector<1x256xf32>
    %43 = vector.broadcast %42 : vector<1x256xf32> to vector<16x256xf32>
    %44 = arith.addf %41, %43 : vector<16x256xf32>
    %45 = arith.truncf %44 : vector<16x256xf32> to vector<16x256xbf16>
    %cst_28 = arith.constant 0.000000e+00 : bf16
    %46 = vector.broadcast %cst_28 : bf16 to vector<16x256xbf16>
    %47 = arith.cmpf ogt, %45, %46 : vector<16x256xbf16>
    %48 = math.exp %45 : vector<16x256xbf16>
    %cst_29 = arith.constant 1.000000e+00 : bf16
    %49 = vector.broadcast %cst_29 : bf16 to vector<16x256xbf16>
    %50 = arith.subf %48, %49 : vector<16x256xbf16>
    %cst_30 = arith.constant 1.671880e+00 : bf16
    %51 = vector.broadcast %cst_30 : bf16 to vector<16x256xbf16>
    %52 = arith.mulf %51, %50 : vector<16x256xbf16>
    %53 = arith.select %47, %45, %52 : vector<16x256xi1>, vector<16x256xbf16>
    %c0_31 = arith.constant 0 : index
    %c0_32 = arith.constant 0 : index
    %54 = vector.load %arg11[%c0_31, %c0_32] : memref<256x256xbf16, #tpu.memory_space<vmem>>, vector<256x256xbf16>
    %cst_33 = arith.constant dense<0.000000e+00> : vector<16x256xf32>
    %55 = tpu.matmul %53, %54, %cst_33 {dimension_numbers = #tpu.dot_dimension_numbers<[1], [0], [0], [1], [0, 0, 1, 1], [], []>} : vector<16x256xbf16>, vector<256x256xbf16>, vector<16x256xf32> -> vector<16x256xf32>
    %c0_34 = arith.constant 0 : index
    %c0_35 = arith.constant 0 : index
    %56 = vector.load %arg12[%c0_34, %c0_35] : memref<1x256xf32, #tpu.memory_space<vmem>>, vector<1x256xf32>
    %57 = vector.broadcast %56 : vector<1x256xf32> to vector<16x256xf32>
    %58 = arith.addf %55, %57 : vector<16x256xf32>
    %59 = arith.truncf %58 : vector<16x256xf32> to vector<16x256xbf16>
    %cst_36 = arith.constant 0.000000e+00 : bf16
    %60 = vector.broadcast %cst_36 : bf16 to vector<16x256xbf16>
    %61 = arith.cmpf ogt, %59, %60 : vector<16x256xbf16>
    %62 = math.exp %59 : vector<16x256xbf16>
    %cst_37 = arith.constant 1.000000e+00 : bf16
    %63 = vector.broadcast %cst_37 : bf16 to vector<16x256xbf16>
    %64 = arith.subf %62, %63 : vector<16x256xbf16>
    %cst_38 = arith.constant 1.671880e+00 : bf16
    %65 = vector.broadcast %cst_38 : bf16 to vector<16x256xbf16>
    %66 = arith.mulf %65, %64 : vector<16x256xbf16>
    %67 = arith.select %61, %59, %66 : vector<16x256xi1>, vector<16x256xbf16>
    %c0_39 = arith.constant 0 : index
    %c0_40 = arith.constant 0 : index
    %68 = vector.load %arg13[%c0_39, %c0_40] : memref<256x256xbf16, #tpu.memory_space<vmem>>, vector<256x256xbf16>
    %cst_41 = arith.constant dense<0.000000e+00> : vector<16x256xf32>
    %69 = tpu.matmul %67, %68, %cst_41 {dimension_numbers = #tpu.dot_dimension_numbers<[1], [0], [0], [1], [0, 0, 1, 1], [], []>} : vector<16x256xbf16>, vector<256x256xbf16>, vector<16x256xf32> -> vector<16x256xf32>
    %c0_42 = arith.constant 0 : index
    %c0_43 = arith.constant 0 : index
    %70 = vector.load %arg14[%c0_42, %c0_43] : memref<1x256xf32, #tpu.memory_space<vmem>>, vector<1x256xf32>
    %71 = vector.broadcast %70 : vector<1x256xf32> to vector<16x256xf32>
    %72 = arith.addf %69, %71 : vector<16x256xf32>
    %73 = arith.truncf %72 : vector<16x256xf32> to vector<16x256xbf16>
    %cst_44 = arith.constant 0.000000e+00 : bf16
    %74 = vector.broadcast %cst_44 : bf16 to vector<16x256xbf16>
    %75 = arith.cmpf ogt, %73, %74 : vector<16x256xbf16>
    %76 = math.exp %73 : vector<16x256xbf16>
    %cst_45 = arith.constant 1.000000e+00 : bf16
    %77 = vector.broadcast %cst_45 : bf16 to vector<16x256xbf16>
    %78 = arith.subf %76, %77 : vector<16x256xbf16>
    %cst_46 = arith.constant 1.671880e+00 : bf16
    %79 = vector.broadcast %cst_46 : bf16 to vector<16x256xbf16>
    %80 = arith.mulf %79, %78 : vector<16x256xbf16>
    %81 = arith.select %75, %73, %80 : vector<16x256xi1>, vector<16x256xbf16>
    %c0_47 = arith.constant 0 : index
    %c0_48 = arith.constant 0 : index
    %82 = vector.load %arg15[%c0_47, %c0_48] : memref<256x1xbf16, #tpu.memory_space<vmem>>, vector<256x1xbf16>
    %cst_49 = arith.constant dense<0.000000e+00> : vector<16x1xf32>
    %83 = tpu.matmul %81, %82, %cst_49 {dimension_numbers = #tpu.dot_dimension_numbers<[1], [0], [0], [1], [0, 0, 1, 1], [], []>} : vector<16x256xbf16>, vector<256x1xbf16>, vector<16x1xf32> -> vector<16x1xf32>
    %c0_50 = arith.constant 0 : index
    %c0_51 = arith.constant 0 : index
    %84 = vector.load %arg16[%c0_50, %c0_51] : memref<1x1xf32, #tpu.memory_space<vmem>>, vector<1x1xf32>
    %85 = vector.broadcast %84 : vector<1x1xf32> to vector<16x1xf32>
    %86 = arith.addf %83, %85 : vector<16x1xf32>
    %87 = tpu.concatenate %29, %38, %86 in 1 : vector<16x2xf32>, vector<16x1xf32>, vector<16x1xf32> -> vector<16x4xf32>
    %c0_52 = arith.constant 0 : index
    %c0_53 = arith.constant 0 : index
    %88 = vector.load %arg17[%c0_52, %c0_53] : memref<16x4xf32, #tpu.memory_space<vmem>>, vector<16x4xf32>
    tpu.vector_store %arg17[%c0_52, %c0_53], %87 {strides = array<i32>} : memref<16x4xf32, #tpu.memory_space<vmem>>, vector<16x4xf32>,
    return
  }
  func.func @transform_0(%arg0: i32) -> (i32, i32) {
    %c0_i32 = arith.constant 0 : i32
    %c0_i32_0 = arith.constant 0 : i32
    return %arg0, %c0_i32 : i32, i32
  }
  func.func @transform_1(%arg0: i32) -> (i32, i32) {
    %c0_i32 = arith.constant 0 : i32
    %c0_i32_0 = arith.constant 0 : i32
    %c0_i32_1 = arith.constant 0 : i32
    return %c0_i32, %c0_i32_0 : i32, i32
  }
  func.func @transform_2(%arg0: i32) -> (i32, i32) {
    %c0_i32 = arith.constant 0 : i32
    %c0_i32_0 = arith.constant 0 : i32
    %c0_i32_1 = arith.constant 0 : i32
    return %c0_i32, %c0_i32_0 : i32, i32
  }
  func.func @transform_3(%arg0: i32) -> (i32, i32) {
    %c0_i32 = arith.constant 0 : i32
    %c0_i32_0 = arith.constant 0 : i32
    %c0_i32_1 = arith.constant 0 : i32
    return %c0_i32, %c0_i32_0 : i32, i32
  }
  func.func @transform_4(%arg0: i32) -> (i32, i32) {
    %c0_i32 = arith.constant 0 : i32
    %c0_i32_0 = arith.constant 0 : i32
    %c0_i32_1 = arith.constant 0 : i32
    return %c0_i32, %c0_i32_0 : i32, i32
  }
  func.func @transform_5(%arg0: i32) -> (i32, i32) {
    %c0_i32 = arith.constant 0 : i32
    %c0_i32_0 = arith.constant 0 : i32
    %c0_i32_1 = arith.constant 0 : i32
    return %c0_i32, %c0_i32_0 : i32, i32
  }
  func.func @transform_6(%arg0: i32) -> (i32, i32) {
    %c0_i32 = arith.constant 0 : i32
    %c0_i32_0 = arith.constant 0 : i32
    %c0_i32_1 = arith.constant 0 : i32
    return %c0_i32, %c0_i32_0 : i32, i32
  }
  func.func @transform_7(%arg0: i32) -> (i32, i32) {
    %c0_i32 = arith.constant 0 : i32
    %c0_i32_0 = arith.constant 0 : i32
    %c0_i32_1 = arith.constant 0 : i32
    return %c0_i32, %c0_i32_0 : i32, i32
  }
  func.func @transform_8(%arg0: i32) -> (i32, i32) {
    %c0_i32 = arith.constant 0 : i32
    %c0_i32_0 = arith.constant 0 : i32
    %c0_i32_1 = arith.constant 0 : i32
    return %c0_i32, %c0_i32_0 : i32, i32
  }
  func.func @transform_9(%arg0: i32) -> (i32, i32) {
    %c0_i32 = arith.constant 0 : i32
    %c0_i32_0 = arith.constant 0 : i32
    %c0_i32_1 = arith.constant 0 : i32
    return %c0_i32, %c0_i32_0 : i32, i32
  }
  func.func @transform_10(%arg0: i32) -> (i32, i32) {
    %c0_i32 = arith.constant 0 : i32
    %c0_i32_0 = arith.constant 0 : i32
    %c0_i32_1 = arith.constant 0 : i32
    return %c0_i32, %c0_i32_0 : i32, i32
  }
  func.func @transform_11(%arg0: i32) -> (i32, i32) {
    %c0_i32 = arith.constant 0 : i32
    %c0_i32_0 = arith.constant 0 : i32
    %c0_i32_1 = arith.constant 0 : i32
    return %c0_i32, %c0_i32_0 : i32, i32
  }
  func.func @transform_12(%arg0: i32) -> (i32, i32) {
    %c0_i32 = arith.constant 0 : i32
    %c0_i32_0 = arith.constant 0 : i32
    %c0_i32_1 = arith.constant 0 : i32
    return %c0_i32, %c0_i32_0 : i32, i32
  }
  func.func @transform_13(%arg0: i32) -> (i32, i32) {
    %c0_i32 = arith.constant 0 : i32
    %c0_i32_0 = arith.constant 0 : i32
    %c0_i32_1 = arith.constant 0 : i32
    return %c0_i32, %c0_i32_0 : i32, i32
  }
  func.func @transform_14(%arg0: i32) -> (i32, i32) {
    %c0_i32 = arith.constant 0 : i32
    %c0_i32_0 = arith.constant 0 : i32
    %c0_i32_1 = arith.constant 0 : i32
    return %c0_i32, %c0_i32_0 : i32, i32
  }
  func.func @transform_15(%arg0: i32) -> (i32, i32) {
    %c0_i32 = arith.constant 0 : i32
    %c0_i32_0 = arith.constant 0 : i32
    %c0_i32_1 = arith.constant 0 : i32
    return %c0_i32, %c0_i32_0 : i32, i32
  }
  func.func @transform_16(%arg0: i32) -> (i32, i32) {
    %c0_i32 = arith.constant 0 : i32
    %c0_i32_0 = arith.constant 0 : i32
    return %arg0, %c0_i32 : i32, i32
  }
}

</mosaic_0001>

<llo_original>
// kernel: tpu_custom_call.1
$region0: #{tpu_custom_call.1}
  #allocation0 [shape = 'u32[]', space=smem, size = 0x4, offset = 0x4, fixed_abs, tag = 'smem constant byte address 0x4 - core index']
  #allocation1 [shape = 'u32[72,128]{1,0:T(1,128)}', space=vmem, size = 0x9000, scoped, tag = 'internal scratch']
  #allocation2 [shape = 'f32[1,1]{1,0:T(1,128)S(1)}', space=vmem, size = 0x200, scoped, tag = 'scoped memory for tpu_custom_call.1']
  %s0 = inlined_call_operand.vmem [shape: f32[16,10], index: 0, kind: input, shape index: {}]
  %s1 = inlined_call_operand.vmem [shape: f32[1,2], index: 1, kind: input, shape index: {}]
  %s2 = inlined_call_operand.vmem [shape: f32[8,32], index: 2, kind: input, shape index: {}]
  %s3 = inlined_call_operand.vmem [shape: f32[1,32], index: 3, kind: input, shape index: {}]
  %s4 = inlined_call_operand.vmem [shape: f32[32,32], index: 4, kind: input, shape index: {}]
  %s5 = inlined_call_operand.vmem [shape: f32[1,32], index: 5, kind: input, shape index: {}]
  %s6 = inlined_call_operand.vmem [shape: f32[32,2], index: 6, kind: input, shape index: {}]
  %s7 = inlined_call_operand.vmem [shape: f32[1,2], index: 7, kind: input, shape index: {}]
  %s8 = inlined_call_operand.vmem [shape: bf16[8,256], index: 8, kind: input, shape index: {}]
  %s9 = inlined_call_operand.vmem [shape: f32[1,256], index: 9, kind: input, shape index: {}]
  %s10 = inlined_call_operand.hbm [shape: bf16[256,256], index: 10, kind: input, shape index: {}]
  %s11 = inlined_call_operand.vmem [shape: f32[1,256], index: 11, kind: input, shape index: {}]
  %s12 = inlined_call_operand.hbm [shape: bf16[256,256], index: 12, kind: input, shape index: {}]
  %s13 = inlined_call_operand.vmem [shape: f32[1,256], index: 13, kind: input, shape index: {}]
  %s14 = inlined_call_operand.vmem [shape: bf16[256,1], index: 14, kind: input, shape index: {}]
  %s15 = inlined_call_operand.<no memory space> [shape: f32[1,1], index: 15, kind: input, shape index: {}]
  %s16 = inlined_call_operand.vmem [shape: f32[16,4], index: 16, kind: output, shape index: {}]
  %s17 = sld [smem:[#allocation0]]
  $region82: #{tpu_custom_call.1} parent=0
    _
  %s19 = ssub.s32 1, %s17
  %s20 = scalar_select 0, %s19, %s17
  %v21 = vstv %s15
  %22 = vst [vmem:[#allocation2] sm:$0x1] %v21
  $region1: #{tpu_custom_call.1} parent=0
    #allocation3 [shape = 'u8[131072]{0}', space=vmem, size = 0x20000, scoped, tag = 'input window, operand 10, single buffered']
    #allocation4 [shape = 's32[1]{0}', space=sflag, size = 0x4, scoped, tag = 'scoped memory for tpu_custom_call.1']
    #allocation5 [shape = 'u8[131072]{0}', space=vmem, size = 0x20000, scoped, tag = 'input window, operand 12, single buffered']
    #allocation6 [shape = 's32[1]{0}', space=sflag, size = 0x4, scoped, tag = 'scoped memory for tpu_custom_call.1']
    %23 = vsyncpa [#allocation4], 0
    %24 = vsyncpa [#allocation6], 0
    // Predicated region
    $region2: #{tpu_custom_call.1} parent=1 // pred_check
      _
    $region3: #{tpu_custom_call.1} parent=1 // pred_check_branch
      %26 = sbr.rel (0) target = $region5
    $region4: #{tpu_custom_call.1} parent=1 // pred_region
      _
    $region5: #{tpu_custom_call.1} parent=1 // pred_fallthru
      _
    // Predicated region
    $region6: #{tpu_custom_call.1} parent=1 // pred_check
      _
    $region7: #{tpu_custom_call.1} parent=1 // pred_check_branch
      %28 = sbr.rel (0) target = $region9
    $region8: #{tpu_custom_call.1} parent=1 // pred_region
      _
    $region9: #{tpu_custom_call.1} parent=1 // pred_fallthru
      _
    // Predicated region
    $region10: #{tpu_custom_call.1} parent=1 // pred_check
      _
    $region11: #{tpu_custom_call.1} parent=1 // pred_check_branch
      %30 = sbr.rel (0) target = $region13
    $region12: #{tpu_custom_call.1} parent=1 // pred_region
      _
    $region13: #{tpu_custom_call.1} parent=1 // pred_fallthru
      _
    // Predicated region
    $region14: #{tpu_custom_call.1} parent=1 // pred_check
      _
    $region15: #{tpu_custom_call.1} parent=1 // pred_check_branch
      %32 = sbr.rel (0) target = $region17
    $region16: #{tpu_custom_call.1} parent=1 // pred_region
      _
    $region17: #{tpu_custom_call.1} parent=1 // pred_fallthru
      _
    // Predicated region
    $region18: #{tpu_custom_call.1} parent=1 // pred_check
      _
    $region19: #{tpu_custom_call.1} parent=1 // pred_check_branch
      %34 = sbr.rel (0) target = $region21
    $region20: #{tpu_custom_call.1} parent=1 // pred_region
      _
    $region21: #{tpu_custom_call.1} parent=1 // pred_fallthru
      _
    // Predicated region
    $region22: #{tpu_custom_call.1} parent=1 // pred_check
      _
    $region23: #{tpu_custom_call.1} parent=1 // pred_check_branch
      %36 = sbr.rel (0) target = $region25
    $region24: #{tpu_custom_call.1} parent=1 // pred_region
      _
    $region25: #{tpu_custom_call.1} parent=1 // pred_fallthru
      _
    // Predicated region
    $region26: #{tpu_custom_call.1} parent=1 // pred_check
      _
    $region27: #{tpu_custom_call.1} parent=1 // pred_check_branch
      %38 = sbr.rel (0) target = $region29
    $region28: #{tpu_custom_call.1} parent=1 // pred_region
      _
    $region29: #{tpu_custom_call.1} parent=1 // pred_fallthru
      _
    // Predicated region
    $region30: #{tpu_custom_call.1} parent=1 // pred_check
      _
    $region31: #{tpu_custom_call.1} parent=1 // pred_check_branch
      %40 = sbr.rel (0) target = $region33
    $region32: #{tpu_custom_call.1} parent=1 // pred_region
      _
    $region33: #{tpu_custom_call.1} parent=1 // pred_fallthru
      _
    // Predicated region
    $region34: #{tpu_custom_call.1} parent=1 // pred_check
      _
    $region35: #{tpu_custom_call.1} parent=1 // pred_check_branch
      %42 = sbr.rel (0) target = $region37
    $region36: #{tpu_custom_call.1} parent=1 // pred_region
      _
    $region37: #{tpu_custom_call.1} parent=1 // pred_fallthru
      _
    // Predicated region
    $region38: #{tpu_custom_call.1} parent=1 // pred_check
      _
    $region39: #{tpu_custom_call.1} parent=1 // pred_check_branch
      %44 = sbr.rel (0) target = $region41
    $region40: #{tpu_custom_call.1} parent=1 // pred_region
      _
    $region41: #{tpu_custom_call.1} parent=1 // pred_fallthru
      _
    // Predicated region
    $region42: #{tpu_custom_call.1} parent=1 // pred_check
      _
    $region43: #{tpu_custom_call.1} parent=1 // pred_check_branch
      %46 = sbr.rel (0) target = $region45
    $region44: #{tpu_custom_call.1} parent=1 // pred_region
      %48 = vsyncadd [#allocation4], 0
      %s49 = sshll.u32 %s10, 4
      %s50 = int_to_ptr.hbm [resolvable:$true] %s49
      %s51 = sshll.u32 [#allocation3], 4
      %s52 = int_to_ptr.vmem [resolvable:$true] %s51
      %57 = dma.hbm_to_vmem [thread:$0]  %s50, 4096, %s52, [#allocation4], 128, 128, 8
    $region45: #{tpu_custom_call.1} parent=1 // pred_fallthru
      _
    // Predicated region
    $region46: #{tpu_custom_call.1} parent=1 // pred_check
      _
    $region47: #{tpu_custom_call.1} parent=1 // pred_check_branch
      %59 = sbr.rel (0) target = $region49
    $region48: #{tpu_custom_call.1} parent=1 // pred_region
      _
    $region49: #{tpu_custom_call.1} parent=1 // pred_fallthru
      _
    // Predicated region
    $region50: #{tpu_custom_call.1} parent=1 // pred_check
      _
    $region51: #{tpu_custom_call.1} parent=1 // pred_check_branch
      %61 = sbr.rel (0) target = $region53
    $region52: #{tpu_custom_call.1} parent=1 // pred_region
      %63 = vsyncadd [#allocation6], 0
      %s64 = sshll.u32 %s12, 4
      %s65 = int_to_ptr.hbm [resolvable:$true] %s64
      %s66 = sshll.u32 [#allocation5], 4
      %s67 = int_to_ptr.vmem [resolvable:$true] %s66
      %72 = dma.hbm_to_vmem [thread:$0]  %s65, 4096, %s67, [#allocation6], 128, 128, 8
    $region53: #{tpu_custom_call.1} parent=1 // pred_fallthru
      _
    // Predicated region
    $region54: #{tpu_custom_call.1} parent=1 // pred_check
      _
    $region55: #{tpu_custom_call.1} parent=1 // pred_check_branch
      %74 = sbr.rel (0) target = $region57
    $region56: #{tpu_custom_call.1} parent=1 // pred_region
      _
    $region57: #{tpu_custom_call.1} parent=1 // pred_fallthru
      _
    // Predicated region
    $region58: #{tpu_custom_call.1} parent=1 // pred_check
      _
    $region59: #{tpu_custom_call.1} parent=1 // pred_check_branch
      %76 = sbr.rel (0) target = $region61
    $region60: #{tpu_custom_call.1} parent=1 // pred_region
      _
    $region61: #{tpu_custom_call.1} parent=1 // pred_fallthru
      _
    // Predicated region
    $region62: #{tpu_custom_call.1} parent=1 // pred_check
      _
    $region63: #{tpu_custom_call.1} parent=1 // pred_check_branch
      %78 = sbr.rel (0) target = $region65
    $region64: #{tpu_custom_call.1} parent=1 // pred_region
      _
    $region65: #{tpu_custom_call.1} parent=1 // pred_fallthru
      _
    // Predicated region
    $region66: #{tpu_custom_call.1} parent=1 // pred_check
      _
    $region67: #{tpu_custom_call.1} parent=1 // pred_check_branch
      %80 = sbr.rel (0) target = $region69
    $region68: #{tpu_custom_call.1} parent=1 // pred_region
      %82 = dma.done [#allocation4], 4096
    $region69: #{tpu_custom_call.1} parent=1 // pred_fallthru
      _
    // Predicated region
    $region70: #{tpu_custom_call.1} parent=1 // pred_check
      _
    $region71: #{tpu_custom_call.1} parent=1 // pred_check_branch
      %84 = sbr.rel (0) target = $region73
    $region72: #{tpu_custom_call.1} parent=1 // pred_region
      %86 = dma.done [#allocation6], 4096
    $region73: #{tpu_custom_call.1} parent=1 // pred_fallthru
      _
    %v88 = vld [vmem:[%s0] sm:$0xff]
    %v89 = vld [vmem:[%s0 + $0x8] sm:$0xff]
    %v90 = vld [vmem:[%s2] sm:$0xff]
    %v91 = vld [vmem:[%s3] sm:$0x1]
    %v93 = vperm.slane %v91, 0
    %vm95 = vcmask 64512
    %v97 = vsel %vm95, %v88, 0
    %v100 = vsel %vm95, %v89, 0
    %102 = vmatpush.msra.mxu0 0.0
    %103 = vmatpush.msra.mxu0 0.0
    %104 = vmatpush.msra.mxu0 0.0
    %105 = vmatpush.msra.mxu0 0.0
    %106 = vmatpush.msra.mxu0 0.0
    %107 = vmatpush.msra.mxu0 0.0
    %108 = vmatpush.msra.mxu0 0.0
    %109 = vmatpush.msra.mxu0 0.0
    %110 = vmatpush.msra.mxu0 0.0
    %111 = vmatpush.msra.mxu0 0.0
    %112 = vmatpush.msra.mxu0 0.0
    %113 = vmatpush.msra.mxu0 0.0
    %114 = vmatpush.msra.mxu0 0.0
    %115 = vmatpush.msra.mxu0 0.0
    %116 = vmatpush.msra.mxu0 0.0
    %117 = vmatpush.msra.mxu0 %v90
    %118 = vmatmul.f32.gmra.mxu0 %v97
    %v119 = vpop.f32.mrf.mxu0
    %v120 = vadd.f32 %v93, %v119
    %121 = vmatmul.f32.gmra.mxu0 %v100
    %v122 = vpop.f32.mrf.mxu0
    %v123 = vadd.f32 %v93, %v122
    %124 = vdwg.mxu0
    %vm125 = vcmp.gt.f32.partialorder %v120, 0.0
    %vm126 = vcmp.gt.f32.partialorder %v123, 0.0
    %v127 = vmul.f32 %v120, 1.442695
    %v128 = vpow.pop %v127
    %v129 = vmul.f32 %v123, 1.442695
    %v130 = vpow.pop %v129
    %v131 = vsub.f32 %v128, 1.0
    %v132 = vsub.f32 %v130, 1.0
    %v133 = vsel %vm125, %v120, %v131
    %v134 = vsel %vm126, %v123, %v132
    %v135 = vld [vmem:[%s4] sm:$0xff]
    %v136 = vld [vmem:[%s4 + $0x8] sm:$0xff]
    %v137 = vld [vmem:[%s4 + $0x10] sm:$0xff]
    %v138 = vld [vmem:[%s4 + $0x18] sm:$0xff]
    %v139 = vld [vmem:[%s5] sm:$0x1]
    %v141 = vperm.slane %v139, 0
    %vm143 = vcmask 261120
    %v145 = vsel %vm143, %v133, 0
    %v148 = vsel %vm143, %v134, 0
    %150 = vmatpush.msra.mxu0 0.0
    %151 = vmatpush.msra.mxu0 0.0
    %152 = vmatpush.msra.mxu0 0.0
    %153 = vmatpush.msra.mxu0 0.0
    %154 = vmatpush.msra.mxu0 0.0
    %155 = vmatpush.msra.mxu0 0.0
    %156 = vmatpush.msra.mxu0 0.0
    %157 = vmatpush.msra.mxu0 0.0
    %158 = vmatpush.msra.mxu0 0.0
    %159 = vmatpush.msra.mxu0 0.0
    %160 = vmatpush.msra.mxu0 0.0
    %161 = vmatpush.msra.mxu0 0.0
    %162 = vmatpush.msra.mxu0 %v138
    %163 = vmatpush.msra.mxu0 %v137
    %164 = vmatpush.msra.mxu0 %v136
    %165 = vmatpush.msra.mxu0 %v135
    %166 = vmatmul.f32.gmra.mxu0 %v145
    %v167 = vpop.f32.mrf.mxu0
    %v168 = vadd.f32 %v141, %v167
    %169 = vmatmul.f32.gmra.mxu0 %v148
    %v170 = vpop.f32.mrf.mxu0
    %v171 = vadd.f32 %v141, %v170
    %172 = vdwg.mxu0
    %vm173 = vcmp.gt.f32.partialorder %v168, 0.0
    %vm174 = vcmp.gt.f32.partialorder %v171, 0.0
    %v175 = vmul.f32 %v168, 1.442695
    %v176 = vpow.pop %v175
    %v177 = vmul.f32 %v171, 1.442695
    %v178 = vpow.pop %v177
    %v179 = vsub.f32 %v176, 1.0
    %v180 = vsub.f32 %v178, 1.0
    %v181 = vsel %vm173, %v168, %v179
    %v182 = vsel %vm174, %v171, %v180
    %v183 = vld [vmem:[%s6] sm:$0xff]
    %v184 = vld [vmem:[%s6 + $0x8] sm:$0xff]
    %v185 = vld [vmem:[%s6 + $0x10] sm:$0xff]
    %v186 = vld [vmem:[%s6 + $0x18] sm:$0xff]
    %v187 = vld [vmem:[%s7] sm:$0x1]
    %v189 = vperm.slane %v187, 0
    %v192 = vsel %vm143, %v181, 0
    %v195 = vsel %vm143, %v182, 0
    %197 = vmatpush.msra.mxu0 0.0
    %198 = vmatpush.msra.mxu0 0.0
    %199 = vmatpush.msra.mxu0 0.0
    %200 = vmatpush.msra.mxu0 0.0
    %201 = vmatpush.msra.mxu0 0.0
    %202 = vmatpush.msra.mxu0 0.0
    %203 = vmatpush.msra.mxu0 0.0
    %204 = vmatpush.msra.mxu0 0.0
    %205 = vmatpush.msra.mxu0 0.0
    %206 = vmatpush.msra.mxu0 0.0
    %207 = vmatpush.msra.mxu0 0.0
    %208 = vmatpush.msra.mxu0 0.0
    %209 = vmatpush.msra.mxu0 %v186
    %210 = vmatpush.msra.mxu0 %v185
    %211 = vmatpush.msra.mxu0 %v184
    %212 = vmatpush.msra.mxu0 %v183
    %213 = vmatmul.f32.gmra.mxu0 %v192
    %v214 = vpop.f32.mrf.mxu0
    %v215 = vadd.f32 %v189, %v214
    %216 = vmatmul.f32.gmra.mxu0 %v195
    %v217 = vpop.f32.mrf.mxu0
    %v218 = vadd.f32 %v189, %v217
    %219 = vdwg.mxu0
    %222 = vrot.lane.b32.xlu0 %v215, 8
    %v223 = vpop.permute.xlu0 %222
    %224 = vrot.lane.b32.xlu0 %v218, 8
    %v225 = vpop.permute.xlu0 %224
    %v228 = vsub.f32 %v88, %v223
    %v229 = vsub.f32 %v89, %v225
    %v230 = vld [vmem:[%s1] sm:$0x1]
    %v232 = vperm.slane %v230, 0
    %233 = vrot.lane.b32.xlu0 %v232, 8
    %v234 = vpop.permute.xlu0 %233
    %v236 = vmul.f32 %v228, %v234
    %v237 = vmul.f32 %v229, %v234
    %v238 = vmul.f32 %v236, %v236
    %v239 = vmul.f32 %v237, %v237
    %242 = vrot.lane.b32.xlu0 %v238, 120
    %v243 = vpop.permute.xlu0 %242
    %244 = vrot.lane.b32.xlu0 %v239, 120
    %v245 = vpop.permute.xlu0 %244
    %vm248 = vcmask 15360
    %v249 = vsel %vm248, %v243, 0.0
    %250 = vadd.xlane.f32.xlu0 %v249
    %v251 = vpop.xlane.xlu0 %250
    %v252 = vsel %vm248, %v245, 0.0
    %253 = vadd.xlane.f32.xlu0 %v252
    %v254 = vpop.xlane.xlu0 %253
    %v255 = vmul.f32 %v251, -0.5
    %v256 = vmul.f32 %v254, -0.5
    %v257 = vpack.c.bf16 %v89, %v88
    %v258 = vld [vmem:[%s8] sm:$0xff]
    %v259 = vld [vmem:[%s9] sm:$0x3]
    %v261 = vperm.slane %v259, 0
    %v262 = vperm.slane %v259, 1
    %v266 = vunpack.c.l.b16 %v258
    %v267 = vunpack.c.h.b16 %v258
    %v268 = vpack.c.b16 %v266, %v266
    %v269 = vpack.c.b16 %v267, %v267
    %v271 = vsel %vm95, %v257, 0
    %vm273 = vcmask 1043456
    %v275 = vsel %vm273, %v268, 0
    %v278 = vsel %vm273, %v269, 0
    %280 = vmatpush.bf16.msra.mxu0 0
    %281 = vmatpush.bf16.msra.mxu0 0
    %282 = vmatpush.bf16.msra.mxu0 0
    %283 = vmatpush.bf16.msra.mxu0 0
    %284 = vmatpush.bf16.msra.mxu0 0
    %285 = vmatpush.bf16.msra.mxu0 0
    %286 = vmatpush.bf16.msra.mxu0 0
    %287 = vmatpush.bf16.msra.mxu0 %v275
    %288 = vmatmul.bf16.gmra.mxu0 %v271
    %v289 = vpop.f32.mrf.mxu0
    %v290 = vadd.f32 %v261, %v289
    %v291 = vpop.f32.mrf.mxu0
    %v292 = vadd.f32 %v261, %v291
    %293 = vdwg.mxu0
    %294 = vmatpush.bf16.msra.mxu0 0
    %295 = vmatpush.bf16.msra.mxu0 0
    %296 = vmatpush.bf16.msra.mxu0 0
    %297 = vmatpush.bf16.msra.mxu0 0
    %298 = vmatpush.bf16.msra.mxu0 0
    %299 = vmatpush.bf16.msra.mxu0 0
    %300 = vmatpush.bf16.msra.mxu0 0
    %301 = vmatpush.bf16.msra.mxu0 %v278
    %302 = vmatmul.bf16.gmra.mxu0 %v271
    %v303 = vpop.f32.mrf.mxu0
    %v304 = vadd.f32 %v262, %v303
    %v305 = vpop.f32.mrf.mxu0
    %v306 = vadd.f32 %v262, %v305
    %307 = vdwg.mxu0
    %v308 = vpack.c.bf16 %v304, %v290
    %v309 = vpack.c.bf16 %v306, %v292
    %v310 = vunpack.c.l.bf16 %v308
    %v311 = vunpack.c.h.bf16 %v308
    %v312 = vunpack.c.l.bf16 %v309
    %v313 = vunpack.c.h.bf16 %v309
    %vm314 = vcmp.gt.f32.partialorder %v310, 0.0
    %vm315 = vcmp.gt.f32.partialorder %v311, 0.0
    %vm316 = vcmp.gt.f32.partialorder %v312, 0.0
    %vm317 = vcmp.gt.f32.partialorder %v313, 0.0
    %v318 = vmul.f32 %v310, 1.442695
    %v319 = vpow.pop %v318
    %v320 = vmul.f32 %v311, 1.442695
    %v321 = vpow.pop %v320
    %v322 = vmul.f32 %v312, 1.442695
    %v323 = vpow.pop %v322
    %v324 = vmul.f32 %v313, 1.442695
    %v325 = vpow.pop %v324
    %v326 = vpack.c.bf16 %v321, %v319
    %v327 = vpack.c.bf16 %v325, %v323
    %v328 = vunpack.c.l.bf16 %v326
    %v329 = vunpack.c.h.bf16 %v326
    %v330 = vunpack.c.l.bf16 %v327
    %v331 = vunpack.c.h.bf16 %v327
    %v332 = vsub.f32 %v328, 1.0
    %v333 = vsub.f32 %v329, 1.0
    %v334 = vsub.f32 %v330, 1.0
    %v335 = vsub.f32 %v331, 1.0
    %v336 = vpack.c.bf16 %v333, %v332
    %v337 = vpack.c.bf16 %v335, %v334
    %v338 = vunpack.c.l.bf16 %v336
    %v339 = vunpack.c.h.bf16 %v336
    %v340 = vunpack.c.l.bf16 %v337
    %v341 = vunpack.c.h.bf16 %v337
    %v342 = vmul.f32 %v338, 1.671875
    %v343 = vmul.f32 %v339, 1.671875
    %v344 = vmul.f32 %v340, 1.671875
    %v345 = vmul.f32 %v341, 1.671875
    %v346 = vpack.c.bf16 %v343, %v342
    %v347 = vpack.c.bf16 %v345, %v344
    %vm348 = vmpackc.low %vm315, %vm314
    %vm349 = vmpackc.low %vm317, %vm316
    %v350 = vsel %vm348, %v308, %v346
    %v351 = vsel %vm349, %v309, %v347
    %v352 = vld [vmem:[#allocation3] sm:$0xff]
    %v353 = vld [vmem:[#allocation3 + $0x8] sm:$0xff]
    %v354 = vld [vmem:[#allocation3 + $0x10] sm:$0xff]
    %v355 = vld [vmem:[#allocation3 + $0x18] sm:$0xff]
    %v356 = vld [vmem:[#allocation3 + $0x20] sm:$0xff]
    %v357 = vld [vmem:[#allocation3 + $0x28] sm:$0xff]
    %v358 = vld [vmem:[#allocation3 + $0x30] sm:$0xff]
    %v359 = vld [vmem:[#allocation3 + $0x38] sm:$0xff]
    %v360 = vld [vmem:[#allocation3 + $0x40] sm:$0xff]
    %v361 = vld [vmem:[#allocation3 + $0x48] sm:$0xff]
    %v362 = vld [vmem:[#allocation3 + $0x50] sm:$0xff]
    %v363 = vld [vmem:[#allocation3 + $0x58] sm:$0xff]
    %v364 = vld [vmem:[#allocation3 + $0x60] sm:$0xff]
    %v365 = vld [vmem:[#allocation3 + $0x68] sm:$0xff]
    %v366 = vld [vmem:[#allocation3 + $0x70] sm:$0xff]
    %v367 = vld [vmem:[#allocation3 + $0x78] sm:$0xff]
    %v368 = vld [vmem:[#allocation3 + $0x80] sm:$0xff]
    %v369 = vld [vmem:[#allocation3 + $0x88] sm:$0xff]
    %v370 = vld [vmem:[#allocation3 + $0x90] sm:$0xff]
    %v371 = vld [vmem:[#allocation3 + $0x98] sm:$0xff]
    %v372 = vld [vmem:[#allocation3 + $0xa0] sm:$0xff]
    %v373 = vld [vmem:[#allocation3 + $0xa8] sm:$0xff]
    %v374 = vld [vmem:[#allocation3 + $0xb0] sm:$0xff]
    %v375 = vld [vmem:[#allocation3 + $0xb8] sm:$0xff]
    %v376 = vld [vmem:[#allocation3 + $0xc0] sm:$0xff]
    %v377 = vld [vmem:[#allocation3 + $0xc8] sm:$0xff]
    %v378 = vld [vmem:[#allocation3 + $0xd0] sm:$0xff]
    %v379 = vld [vmem:[#allocation3 + $0xd8] sm:$0xff]
    %v380 = vld [vmem:[#allocation3 + $0xe0] sm:$0xff]
    %v381 = vld [vmem:[#allocation3 + $0xe8] sm:$0xff]
    %v382 = vld [vmem:[#allocation3 + $0xf0] sm:$0xff]
    %v383 = vld [vmem:[#allocation3 + $0xf8] sm:$0xff]
    %v384 = vld [vmem:[%s11] sm:$0x3]
    %v386 = vperm.slane %v384, 0
    %v387 = vperm.slane %v384, 1
    %v392 = vunpack.c.l.b16 %v350
    %v393 = vunpack.c.h.b16 %v350
    %v394 = vunpack.c.l.b16 %v351
    %v395 = vunpack.c.h.b16 %v351
    %v396 = vpack.c.b16 %v394, %v392
    %v397 = vpack.c.b16 %v395, %v393
    %v432 = vunpack.c.l.b16 %v352
    %v433 = vunpack.c.h.b16 %v352
    %v434 = vunpack.c.l.b16 %v353
    %v435 = vunpack.c.h.b16 %v353
    %v436 = vunpack.c.l.b16 %v354
    %v437 = vunpack.c.h.b16 %v354
    %v438 = vunpack.c.l.b16 %v355
    %v439 = vunpack.c.h.b16 %v355
    %v440 = vunpack.c.l.b16 %v356
    %v441 = vunpack.c.h.b16 %v356
    %v442 = vunpack.c.l.b16 %v357
    %v443 = vunpack.c.h.b16 %v357
    %v444 = vunpack.c.l.b16 %v358
    %v445 = vunpack.c.h.b16 %v358
    %v446 = vunpack.c.l.b16 %v359
    %v447 = vunpack.c.h.b16 %v359
    %v448 = vunpack.c.l.b16 %v360
    %v449 = vunpack.c.h.b16 %v360
    %v450 = vunpack.c.l.b16 %v361
    %v451 = vunpack.c.h.b16 %v361
    %v452 = vunpack.c.l.b16 %v362
    %v453 = vunpack.c.h.b16 %v362
    %v454 = vunpack.c.l.b16 %v363
    %v455 = vunpack.c.h.b16 %v363
    %v456 = vunpack.c.l.b16 %v364
    %v457 = vunpack.c.h.b16 %v364
    %v458 = vunpack.c.l.b16 %v365
    %v459 = vunpack.c.h.b16 %v365
    %v460 = vunpack.c.l.b16 %v366
    %v461 = vunpack.c.h.b16 %v366
    %v462 = vunpack.c.l.b16 %v367
    %v463 = vunpack.c.h.b16 %v367
    %v464 = vunpack.c.l.b16 %v368
    %v465 = vunpack.c.h.b16 %v368
    %v466 = vunpack.c.l.b16 %v369
    %v467 = vunpack.c.h.b16 %v369
    %v468 = vunpack.c.l.b16 %v370
    %v469 = vunpack.c.h.b16 %v370
    %v470 = vunpack.c.l.b16 %v371
    %v471 = vunpack.c.h.b16 %v371
    %v472 = vunpack.c.l.b16 %v372
    %v473 = vunpack.c.h.b16 %v372
    %v474 = vunpack.c.l.b16 %v373
    %v475 = vunpack.c.h.b16 %v373
    %v476 = vunpack.c.l.b16 %v374
    %v477 = vunpack.c.h.b16 %v374
    %v478 = vunpack.c.l.b16 %v375
    %v479 = vunpack.c.h.b16 %v375
    %v480 = vunpack.c.l.b16 %v376
    %v481 = vunpack.c.h.b16 %v376
    %v482 = vunpack.c.l.b16 %v377
    %v483 = vunpack.c.h.b16 %v377
    %v484 = vunpack.c.l.b16 %v378
    %v485 = vunpack.c.h.b16 %v378
    %v486 = vunpack.c.l.b16 %v379
    %v487 = vunpack.c.h.b16 %v379
    %v488 = vunpack.c.l.b16 %v380
    %v489 = vunpack.c.h.b16 %v380
    %v490 = vunpack.c.l.b16 %v381
    %v491 = vunpack.c.h.b16 %v381
    %v492 = vunpack.c.l.b16 %v382
    %v493 = vunpack.c.h.b16 %v382
    %v494 = vunpack.c.l.b16 %v383
    %v495 = vunpack.c.h.b16 %v383
    %v496 = vpack.c.b16 %v434, %v432
    %v497 = vpack.c.b16 %v435, %v433
    %v498 = vpack.c.b16 %v438, %v436
    %v499 = vpack.c.b16 %v439, %v437
    %v500 = vpack.c.b16 %v442, %v440
    %v501 = vpack.c.b16 %v443, %v441
    %v502 = vpack.c.b16 %v446, %v444
    %v503 = vpack.c.b16 %v447, %v445
    %v504 = vpack.c.b16 %v450, %v448
    %v505 = vpack.c.b16 %v451, %v449
    %v506 = vpack.c.b16 %v454, %v452
    %v507 = vpack.c.b16 %v455, %v453
    %v508 = vpack.c.b16 %v458, %v456
    %v509 = vpack.c.b16 %v459, %v457
    %v510 = vpack.c.b16 %v462, %v460
    %v511 = vpack.c.b16 %v463, %v461
    %v512 = vpack.c.b16 %v466, %v464
    %v513 = vpack.c.b16 %v467, %v465
    %v514 = vpack.c.b16 %v470, %v468
    %v515 = vpack.c.b16 %v471, %v469
    %v516 = vpack.c.b16 %v474, %v472
    %v517 = vpack.c.b16 %v475, %v473
    %v518 = vpack.c.b16 %v478, %v476
    %v519 = vpack.c.b16 %v479, %v477
    %v520 = vpack.c.b16 %v482, %v480
    %v521 = vpack.c.b16 %v483, %v481
    %v522 = vpack.c.b16 %v486, %v484
    %v523 = vpack.c.b16 %v487, %v485
    %v524 = vpack.c.b16 %v490, %v488
    %v525 = vpack.c.b16 %v491, %v489
    %v526 = vpack.c.b16 %v494, %v492
    %v527 = vpack.c.b16 %v495, %v493
    %560 = vmatpush.bf16.msra.mxu0 %v510
    %561 = vmatpush.bf16.msra.mxu0 %v508
    %562 = vmatpush.bf16.msra.mxu0 %v506
    %563 = vmatpush.bf16.msra.mxu0 %v504
    %564 = vmatpush.bf16.msra.mxu0 %v502
    %565 = vmatpush.bf16.msra.mxu0 %v500
    %566 = vmatpush.bf16.msra.mxu0 %v498
    %567 = vmatpush.bf16.msra.mxu0 %v496
    %568 = vmatmul.bf16.gmra.mxu0 %v396
    %v569 = vpop.f32.mrf.mxu0
    %v570 = vadd.f32 %v386, %v569
    %v571 = vpop.f32.mrf.mxu0
    %v572 = vadd.f32 %v386, %v571
    %573 = vdwg.mxu0
    %574 = vmatpush.bf16.msra.mxu0 %v526
    %575 = vmatpush.bf16.msra.mxu0 %v524
    %576 = vmatpush.bf16.msra.mxu0 %v522
    %577 = vmatpush.bf16.msra.mxu0 %v520
    %578 = vmatpush.bf16.msra.mxu0 %v518
    %579 = vmatpush.bf16.msra.mxu0 %v516
    %580 = vmatpush.bf16.msra.mxu0 %v514
    %581 = vmatpush.bf16.msra.mxu0 %v512
    %582 = vmatmul.bf16.gmra.mxu0 %v397
    %v583 = vpop.f32.mrf.mxu0
    %v584 = vadd.f32 %v570, %v583
    %v585 = vpop.f32.mrf.mxu0
    %v586 = vadd.f32 %v572, %v585
    %587 = vdwg.mxu0
    %588 = vmatpush.bf16.msra.mxu0 %v511
    %589 = vmatpush.bf16.msra.mxu0 %v509
    %590 = vmatpush.bf16.msra.mxu0 %v507
    %591 = vmatpush.bf16.msra.mxu0 %v505
    %592 = vmatpush.bf16.msra.mxu0 %v503
    %593 = vmatpush.bf16.msra.mxu0 %v501
    %594 = vmatpush.bf16.msra.mxu0 %v499
    %595 = vmatpush.bf16.msra.mxu0 %v497
    %596 = vmatmul.bf16.gmra.mxu0 %v396
    %v597 = vpop.f32.mrf.mxu0
    %v598 = vadd.f32 %v387, %v597
    %v599 = vpop.f32.mrf.mxu0
    %v600 = vadd.f32 %v387, %v599
    %601 = vdwg.mxu0
    %602 = vmatpush.bf16.msra.mxu0 %v527
    %603 = vmatpush.bf16.msra.mxu0 %v525
    %604 = vmatpush.bf16.msra.mxu0 %v523
    %605 = vmatpush.bf16.msra.mxu0 %v521
    %606 = vmatpush.bf16.msra.mxu0 %v519
    %607 = vmatpush.bf16.msra.mxu0 %v517
    %608 = vmatpush.bf16.msra.mxu0 %v515
    %609 = vmatpush.bf16.msra.mxu0 %v513
    %610 = vmatmul.bf16.gmra.mxu0 %v397
    %v611 = vpop.f32.mrf.mxu0
    %v612 = vadd.f32 %v598, %v611
    %v613 = vpop.f32.mrf.mxu0
    %v614 = vadd.f32 %v600, %v613
    %615 = vdwg.mxu0
    %v616 = vpack.c.bf16 %v612, %v584
    %v617 = vpack.c.bf16 %v614, %v586
    %v618 = vunpack.c.l.bf16 %v616
    %v619 = vunpack.c.h.bf16 %v616
    %v620 = vunpack.c.l.bf16 %v617
    %v621 = vunpack.c.h.bf16 %v617
    %vm622 = vcmp.gt.f32.partialorder %v618, 0.0
    %vm623 = vcmp.gt.f32.partialorder %v619, 0.0
    %vm624 = vcmp.gt.f32.partialorder %v620, 0.0
    %vm625 = vcmp.gt.f32.partialorder %v621, 0.0
    %v626 = vmul.f32 %v618, 1.442695
    %v627 = vpow.pop %v626
    %v628 = vmul.f32 %v619, 1.442695
    %v629 = vpow.pop %v628
    %v630 = vmul.f32 %v620, 1.442695
    %v631 = vpow.pop %v630
    %v632 = vmul.f32 %v621, 1.442695
    %v633 = vpow.pop %v632
    %v634 = vpack.c.bf16 %v629, %v627
    %v635 = vpack.c.bf16 %v633, %v631
    %v636 = vunpack.c.l.bf16 %v634
    %v637 = vunpack.c.h.bf16 %v634
    %v638 = vunpack.c.l.bf16 %v635
    %v639 = vunpack.c.h.bf16 %v635
    %v640 = vsub.f32 %v636, 1.0
    %v641 = vsub.f32 %v637, 1.0
    %v642 = vsub.f32 %v638, 1.0
    %v643 = vsub.f32 %v639, 1.0
    %v644 = vpack.c.bf16 %v641, %v640
    %v645 = vpack.c.bf16 %v643, %v642
    %v646 = vunpack.c.l.bf16 %v644
    %v647 = vunpack.c.h.bf16 %v644
    %v648 = vunpack.c.l.bf16 %v645
    %v649 = vunpack.c.h.bf16 %v645
    %v650 = vmul.f32 %v646, 1.671875
    %v651 = vmul.f32 %v647, 1.671875
    %v652 = vmul.f32 %v648, 1.671875
    %v653 = vmul.f32 %v649, 1.671875
    %v654 = vpack.c.bf16 %v651, %v650
    %v655 = vpack.c.bf16 %v653, %v652
    %vm656 = vmpackc.low %vm623, %vm622
    %vm657 = vmpackc.low %vm625, %vm624
    %v658 = vsel %vm656, %v616, %v654
    %v659 = vsel %vm657, %v617, %v655
    %v660 = vld [vmem:[#allocation5] sm:$0xff]
    %v661 = vld [vmem:[#allocation5 + $0x8] sm:$0xff]
    %v662 = vld [vmem:[#allocation5 + $0x10] sm:$0xff]
    %v663 = vld [vmem:[#allocation5 + $0x18] sm:$0xff]
    %v664 = vld [vmem:[#allocation5 + $0x20] sm:$0xff]
    %v665 = vld [vmem:[#allocation5 + $0x28] sm:$0xff]
    %v666 = vld [vmem:[#allocation5 + $0x30] sm:$0xff]
    %v667 = vld [vmem:[#allocation5 + $0x38] sm:$0xff]
    %v668 = vld [vmem:[#allocation5 + $0x40] sm:$0xff]
    %v669 = vld [vmem:[#allocation5 + $0x48] sm:$0xff]
    %v670 = vld [vmem:[#allocation5 + $0x50] sm:$0xff]
    %v671 = vld [vmem:[#allocation5 + $0x58] sm:$0xff]
    %v672 = vld [vmem:[#allocation5 + $0x60] sm:$0xff]
    %v673 = vld [vmem:[#allocation5 + $0x68] sm:$0xff]
    %v674 = vld [vmem:[#allocation5 + $0x70] sm:$0xff]
    %v675 = vld [vmem:[#allocation5 + $0x78] sm:$0xff]
    %v676 = vld [vmem:[#allocation5 + $0x80] sm:$0xff]
    %v677 = vld [vmem:[#allocation5 + $0x88] sm:$0xff]
    %v678 = vld [vmem:[#allocation5 + $0x90] sm:$0xff]
    %v679 = vld [vmem:[#allocation5 + $0x98] sm:$0xff]
    %v680 = vld [vmem:[#allocation5 + $0xa0] sm:$0xff]
    %v681 = vld [vmem:[#allocation5 + $0xa8] sm:$0xff]
    %v682 = vld [vmem:[#allocation5 + $0xb0] sm:$0xff]
    %v683 = vld [vmem:[#allocation5 + $0xb8] sm:$0xff]
    %v684 = vld [vmem:[#allocation5 + $0xc0] sm:$0xff]
    %v685 = vld [vmem:[#allocation5 + $0xc8] sm:$0xff]
    %v686 = vld [vmem:[#allocation5 + $0xd0] sm:$0xff]
    %v687 = vld [vmem:[#allocation5 + $0xd8] sm:$0xff]
    %v688 = vld [vmem:[#allocation5 + $0xe0] sm:$0xff]
    %v689 = vld [vmem:[#allocation5 + $0xe8] sm:$0xff]
    %v690 = vld [vmem:[#allocation5 + $0xf0] sm:$0xff]
    %v691 = vld [vmem:[#allocation5 + $0xf8] sm:$0xff]
    %v692 = vld [vmem:[%s13] sm:$0x3]
    %v694 = vperm.slane %v692, 0
    %v695 = vperm.slane %v692, 1
    %v700 = vunpack.c.l.b16 %v658
    %v701 = vunpack.c.h.b16 %v658
    %v702 = vunpack.c.l.b16 %v659
    %v703 = vunpack.c.h.b16 %v659
    %v704 = vpack.c.b16 %v702, %v700
    %v705 = vpack.c.b16 %v703, %v701
    %v740 = vunpack.c.l.b16 %v660
    %v741 = vunpack.c.h.b16 %v660
    %v742 = vunpack.c.l.b16 %v661
    %v743 = vunpack.c.h.b16 %v661
    %v744 = vunpack.c.l.b16 %v662
    %v745 = vunpack.c.h.b16 %v662
    %v746 = vunpack.c.l.b16 %v663
    %v747 = vunpack.c.h.b16 %v663
    %v748 = vunpack.c.l.b16 %v664
    %v749 = vunpack.c.h.b16 %v664
    %v750 = vunpack.c.l.b16 %v665
    %v751 = vunpack.c.h.b16 %v665
    %v752 = vunpack.c.l.b16 %v666
    %v753 = vunpack.c.h.b16 %v666
    %v754 = vunpack.c.l.b16 %v667
    %v755 = vunpack.c.h.b16 %v667
    %v756 = vunpack.c.l.b16 %v668
    %v757 = vunpack.c.h.b16 %v668
    %v758 = vunpack.c.l.b16 %v669
    %v759 = vunpack.c.h.b16 %v669
    %v760 = vunpack.c.l.b16 %v670
    %v761 = vunpack.c.h.b16 %v670
    %v762 = vunpack.c.l.b16 %v671
    %v763 = vunpack.c.h.b16 %v671
    %v764 = vunpack.c.l.b16 %v672
    %v765 = vunpack.c.h.b16 %v672
    %v766 = vunpack.c.l.b16 %v673
    %v767 = vunpack.c.h.b16 %v673
    %v768 = vunpack.c.l.b16 %v674
    %v769 = vunpack.c.h.b16 %v674
    %v770 = vunpack.c.l.b16 %v675
    %v771 = vunpack.c.h.b16 %v675
    %v772 = vunpack.c.l.b16 %v676
    %v773 = vunpack.c.h.b16 %v676
    %v774 = vunpack.c.l.b16 %v677
    %v775 = vunpack.c.h.b16 %v677
    %v776 = vunpack.c.l.b16 %v678
    %v777 = vunpack.c.h.b16 %v678
    %v778 = vunpack.c.l.b16 %v679
    %v779 = vunpack.c.h.b16 %v679
    %v780 = vunpack.c.l.b16 %v680
    %v781 = vunpack.c.h.b16 %v680
    %v782 = vunpack.c.l.b16 %v681
    %v783 = vunpack.c.h.b16 %v681
    %v784 = vunpack.c.l.b16 %v682
    %v785 = vunpack.c.h.b16 %v682
    %v786 = vunpack.c.l.b16 %v683
    %v787 = vunpack.c.h.b16 %v683
    %v788 = vunpack.c.l.b16 %v684
    %v789 = vunpack.c.h.b16 %v684
    %v790 = vunpack.c.l.b16 %v685
    %v791 = vunpack.c.h.b16 %v685
    %v792 = vunpack.c.l.b16 %v686
    %v793 = vunpack.c.h.b16 %v686
    %v794 = vunpack.c.l.b16 %v687
    %v795 = vunpack.c.h.b16 %v687
    %v796 = vunpack.c.l.b16 %v688
    %v797 = vunpack.c.h.b16 %v688
    %v798 = vunpack.c.l.b16 %v689
    %v799 = vunpack.c.h.b16 %v689
    %v800 = vunpack.c.l.b16 %v690
    %v801 = vunpack.c.h.b16 %v690
    %v802 = vunpack.c.l.b16 %v691
    %v803 = vunpack.c.h.b16 %v691
    %v804 = vpack.c.b16 %v742, %v740
    %v805 = vpack.c.b16 %v743, %v741
    %v806 = vpack.c.b16 %v746, %v744
    %v807 = vpack.c.b16 %v747, %v745
    %v808 = vpack.c.b16 %v750, %v748
    %v809 = vpack.c.b16 %v751, %v749
    %v810 = vpack.c.b16 %v754, %v752
    %v811 = vpack.c.b16 %v755, %v753
    %v812 = vpack.c.b16 %v758, %v756
    %v813 = vpack.c.b16 %v759, %v757
    %v814 = vpack.c.b16 %v762, %v760
    %v815 = vpack.c.b16 %v763, %v761
    %v816 = vpack.c.b16 %v766, %v764
    %v817 = vpack.c.b16 %v767, %v765
    %v818 = vpack.c.b16 %v770, %v768
    %v819 = vpack.c.b16 %v771, %v769
    %v820 = vpack.c.b16 %v774, %v772
    %v821 = vpack.c.b16 %v775, %v773
    %v822 = vpack.c.b16 %v778, %v776
    %v823 = vpack.c.b16 %v779, %v777
    %v824 = vpack.c.b16 %v782, %v780
    %v825 = vpack.c.b16 %v783, %v781
    %v826 = vpack.c.b16 %v786, %v784
    %v827 = vpack.c.b16 %v787, %v785
    %v828 = vpack.c.b16 %v790, %v788
    %v829 = vpack.c.b16 %v791, %v789
    %v830 = vpack.c.b16 %v794, %v792
    %v831 = vpack.c.b16 %v795, %v793
    %v832 = vpack.c.b16 %v798, %v796
    %v833 = vpack.c.b16 %v799, %v797
    %v834 = vpack.c.b16 %v802, %v800
    %v835 = vpack.c.b16 %v803, %v801
    %868 = vmatpush.bf16.msra.mxu0 %v818
    %869 = vmatpush.bf16.msra.mxu0 %v816
    %870 = vmatpush.bf16.msra.mxu0 %v814
    %871 = vmatpush.bf16.msra.mxu0 %v812
    %872 = vmatpush.bf16.msra.mxu0 %v810
    %873 = vmatpush.bf16.msra.mxu0 %v808
    %874 = vmatpush.bf16.msra.mxu0 %v806
    %875 = vmatpush.bf16.msra.mxu0 %v804
    %876 = vmatmul.bf16.gmra.mxu0 %v704
    %v877 = vpop.f32.mrf.mxu0
    %v878 = vadd.f32 %v694, %v877
    %v879 = vpop.f32.mrf.mxu0
    %v880 = vadd.f32 %v694, %v879
    %881 = vdwg.mxu0
    %882 = vmatpush.bf16.msra.mxu0 %v834
    %883 = vmatpush.bf16.msra.mxu0 %v832
    %884 = vmatpush.bf16.msra.mxu0 %v830
    %885 = vmatpush.bf16.msra.mxu0 %v828
    %886 = vmatpush.bf16.msra.mxu0 %v826
    %887 = vmatpush.bf16.msra.mxu0 %v824
    %888 = vmatpush.bf16.msra.mxu0 %v822
    %889 = vmatpush.bf16.msra.mxu0 %v820
    %890 = vmatmul.bf16.gmra.mxu0 %v705
    %v891 = vpop.f32.mrf.mxu0
    %v892 = vadd.f32 %v878, %v891
    %v893 = vpop.f32.mrf.mxu0
    %v894 = vadd.f32 %v880, %v893
    %895 = vdwg.mxu0
    %896 = vmatpush.bf16.msra.mxu0 %v819
    %897 = vmatpush.bf16.msra.mxu0 %v817
    %898 = vmatpush.bf16.msra.mxu0 %v815
    %899 = vmatpush.bf16.msra.mxu0 %v813
    %900 = vmatpush.bf16.msra.mxu0 %v811
    %901 = vmatpush.bf16.msra.mxu0 %v809
    %902 = vmatpush.bf16.msra.mxu0 %v807
    %903 = vmatpush.bf16.msra.mxu0 %v805
    %904 = vmatmul.bf16.gmra.mxu0 %v704
    %v905 = vpop.f32.mrf.mxu0
    %v906 = vadd.f32 %v695, %v905
    %v907 = vpop.f32.mrf.mxu0
    %v908 = vadd.f32 %v695, %v907
    %909 = vdwg.mxu0
    %910 = vmatpush.bf16.msra.mxu0 %v835
    %911 = vmatpush.bf16.msra.mxu0 %v833
    %912 = vmatpush.bf16.msra.mxu0 %v831
    %913 = vmatpush.bf16.msra.mxu0 %v829
    %914 = vmatpush.bf16.msra.mxu0 %v827
    %915 = vmatpush.bf16.msra.mxu0 %v825
    %916 = vmatpush.bf16.msra.mxu0 %v823
    %917 = vmatpush.bf16.msra.mxu0 %v821
    %918 = vmatmul.bf16.gmra.mxu0 %v705
    %v919 = vpop.f32.mrf.mxu0
    %v920 = vadd.f32 %v906, %v919
    %v921 = vpop.f32.mrf.mxu0
    %v922 = vadd.f32 %v908, %v921
    %923 = vdwg.mxu0
    %v924 = vpack.c.bf16 %v920, %v892
    %v925 = vpack.c.bf16 %v922, %v894
    %v926 = vunpack.c.l.bf16 %v924
    %v927 = vunpack.c.h.bf16 %v924
    %v928 = vunpack.c.l.bf16 %v925
    %v929 = vunpack.c.h.bf16 %v925
    %vm930 = vcmp.gt.f32.partialorder %v926, 0.0
    %vm931 = vcmp.gt.f32.partialorder %v927, 0.0
    %vm932 = vcmp.gt.f32.partialorder %v928, 0.0
    %vm933 = vcmp.gt.f32.partialorder %v929, 0.0
    %v934 = vmul.f32 %v926, 1.442695
    %v935 = vpow.pop %v934
    %v936 = vmul.f32 %v927, 1.442695
    %v937 = vpow.pop %v936
    %v938 = vmul.f32 %v928, 1.442695
    %v939 = vpow.pop %v938
    %v940 = vmul.f32 %v929, 1.442695
    %v941 = vpow.pop %v940
    %v942 = vpack.c.bf16 %v937, %v935
    %v943 = vpack.c.bf16 %v941, %v939
    %v944 = vunpack.c.l.bf16 %v942
    %v945 = vunpack.c.h.bf16 %v942
    %v946 = vunpack.c.l.bf16 %v943
    %v947 = vunpack.c.h.bf16 %v943
    %v948 = vsub.f32 %v944, 1.0
    %v949 = vsub.f32 %v945, 1.0
    %v950 = vsub.f32 %v946, 1.0
    %v951 = vsub.f32 %v947, 1.0
    %v952 = vpack.c.bf16 %v949, %v948
    %v953 = vpack.c.bf16 %v951, %v950
    %v954 = vunpack.c.l.bf16 %v952
    %v955 = vunpack.c.h.bf16 %v952
    %v956 = vunpack.c.l.bf16 %v953
    %v957 = vunpack.c.h.bf16 %v953
    %v958 = vmul.f32 %v954, 1.671875
    %v959 = vmul.f32 %v955, 1.671875
    %v960 = vmul.f32 %v956, 1.671875
    %v961 = vmul.f32 %v957, 1.671875
    %v962 = vpack.c.bf16 %v959, %v958
    %v963 = vpack.c.bf16 %v961, %v960
    %vm964 = vmpackc.low %vm931, %vm930
    %vm965 = vmpackc.low %vm933, %vm932
    %v966 = vsel %vm964, %v924, %v962
    %v967 = vsel %vm965, %v925, %v963
    %v968 = vld [vmem:[%s14] sm:$0xf]
    %v969 = vld [vmem:[%s14 + $0x4] sm:$0xf]
    %v970 = vld [vmem:[%s14 + $0x8] sm:$0xf]
    %v971 = vld [vmem:[%s14 + $0xc] sm:$0xf]
    %v972 = vld [vmem:[%s14 + $0x10] sm:$0xf]
    %v973 = vld [vmem:[%s14 + $0x14] sm:$0xf]
    %v974 = vld [vmem:[%s14 + $0x18] sm:$0xf]
    %v975 = vld [vmem:[%s14 + $0x1c] sm:$0xf]
    %v976 = vld [vmem:[%s14 + $0x20] sm:$0xf]
    %v977 = vld [vmem:[%s14 + $0x24] sm:$0xf]
    %v978 = vld [vmem:[%s14 + $0x28] sm:$0xf]
    %v979 = vld [vmem:[%s14 + $0x2c] sm:$0xf]
    %v980 = vld [vmem:[%s14 + $0x30] sm:$0xf]
    %v981 = vld [vmem:[%s14 + $0x34] sm:$0xf]
    %v982 = vld [vmem:[%s14 + $0x38] sm:$0xf]
    %v983 = vld [vmem:[%s14 + $0x3c] sm:$0xf]
    %v984 = vld [vmem:[%s14 + $0x40] sm:$0xf]
    %v985 = vld [vmem:[%s14 + $0x44] sm:$0xf]
    %v986 = vld [vmem:[%s14 + $0x48] sm:$0xf]
    %v987 = vld [vmem:[%s14 + $0x4c] sm:$0xf]
    %v988 = vld [vmem:[%s14 + $0x50] sm:$0xf]
    %v989 = vld [vmem:[%s14 + $0x54] sm:$0xf]
    %v990 = vld [vmem:[%s14 + $0x58] sm:$0xf]
    %v991 = vld [vmem:[%s14 + $0x5c] sm:$0xf]
    %v992 = vld [vmem:[%s14 + $0x60] sm:$0xf]
    %v993 = vld [vmem:[%s14 + $0x64] sm:$0xf]
    %v994 = vld [vmem:[%s14 + $0x68] sm:$0xf]
    %v995 = vld [vmem:[%s14 + $0x6c] sm:$0xf]
    %v996 = vld [vmem:[%s14 + $0x70] sm:$0xf]
    %v997 = vld [vmem:[%s14 + $0x74] sm:$0xf]
    %v998 = vld [vmem:[%s14 + $0x78] sm:$0xf]
    %v999 = vld [vmem:[%s14 + $0x7c] sm:$0xf]
    %v1000 = vld [vmem:[#allocation2] sm:$0x1]
    %v1002 = vperm.slane %v1000, 0
    %v1006 = vunpack.c.l.b16 %v966
    %v1007 = vunpack.c.h.b16 %v966
    %v1008 = vunpack.c.l.b16 %v967
    %v1009 = vunpack.c.h.b16 %v967
    %v1010 = vpack.c.b16 %v1008, %v1006
    %v1011 = vpack.c.b16 %v1009, %v1007
    %v1046 = vunpack.c.l.b16 %v968
    %v1047 = vunpack.c.l.b16 %v969
    %v1048 = vunpack.c.l.b16 %v970
    %v1049 = vunpack.c.l.b16 %v971
    %v1050 = vunpack.c.l.b16 %v972
    %v1051 = vunpack.c.l.b16 %v973
    %v1052 = vunpack.c.l.b16 %v974
    %v1053 = vunpack.c.l.b16 %v975
    %v1054 = vunpack.c.l.b16 %v976
    %v1055 = vunpack.c.l.b16 %v977
    %v1056 = vunpack.c.l.b16 %v978
    %v1057 = vunpack.c.l.b16 %v979
    %v1058 = vunpack.c.l.b16 %v980
    %v1059 = vunpack.c.l.b16 %v981
    %v1060 = vunpack.c.l.b16 %v982
    %v1061 = vunpack.c.l.b16 %v983
    %v1062 = vunpack.c.l.b16 %v984
    %v1063 = vunpack.c.l.b16 %v985
    %v1064 = vunpack.c.l.b16 %v986
    %v1065 = vunpack.c.l.b16 %v987
    %v1066 = vunpack.c.l.b16 %v988
    %v1067 = vunpack.c.l.b16 %v989
    %v1068 = vunpack.c.l.b16 %v990
    %v1069 = vunpack.c.l.b16 %v991
    %v1070 = vunpack.c.l.b16 %v992
    %v1071 = vunpack.c.l.b16 %v993
    %v1072 = vunpack.c.l.b16 %v994
    %v1073 = vunpack.c.l.b16 %v995
    %v1074 = vunpack.c.l.b16 %v996
    %v1075 = vunpack.c.l.b16 %v997
    %v1076 = vunpack.c.l.b16 %v998
    %v1077 = vunpack.c.l.b16 %v999
    %v1078 = vpack.c.b16 %v1047, %v1046
    %v1079 = vpack.c.b16 %v1049, %v1048
    %v1080 = vpack.c.b16 %v1051, %v1050
    %v1081 = vpack.c.b16 %v1053, %v1052
    %v1082 = vpack.c.b16 %v1055, %v1054
    %v1083 = vpack.c.b16 %v1057, %v1056
    %v1084 = vpack.c.b16 %v1059, %v1058
    %v1085 = vpack.c.b16 %v1061, %v1060
    %v1086 = vpack.c.b16 %v1063, %v1062
    %v1087 = vpack.c.b16 %v1065, %v1064
    %v1088 = vpack.c.b16 %v1067, %v1066
    %v1089 = vpack.c.b16 %v1069, %v1068
    %v1090 = vpack.c.b16 %v1071, %v1070
    %v1091 = vpack.c.b16 %v1073, %v1072
    %v1092 = vpack.c.b16 %v1075, %v1074
    %v1093 = vpack.c.b16 %v1077, %v1076
    %1110 = vmatpush.bf16.msra.mxu0 %v1085
    %1111 = vmatpush.bf16.msra.mxu0 %v1084
    %1112 = vmatpush.bf16.msra.mxu0 %v1083
    %1113 = vmatpush.bf16.msra.mxu0 %v1082
    %1114 = vmatpush.bf16.msra.mxu0 %v1081
    %1115 = vmatpush.bf16.msra.mxu0 %v1080
    %1116 = vmatpush.bf16.msra.mxu0 %v1079
    %1117 = vmatpush.bf16.msra.mxu0 %v1078
    %1118 = vmatmul.bf16.gmra.mxu0 %v1010
    %v1119 = vpop.f32.mrf.mxu0
    %v1120 = vadd.f32 %v1002, %v1119
    %v1121 = vpop.f32.mrf.mxu0
    %v1122 = vadd.f32 %v1002, %v1121
    %1123 = vdwg.mxu0
    %1124 = vmatpush.bf16.msra.mxu0 %v1093
    %1125 = vmatpush.bf16.msra.mxu0 %v1092
    %1126 = vmatpush.bf16.msra.mxu0 %v1091
    %1127 = vmatpush.bf16.msra.mxu0 %v1090
    %1128 = vmatpush.bf16.msra.mxu0 %v1089
    %1129 = vmatpush.bf16.msra.mxu0 %v1088
    %1130 = vmatpush.bf16.msra.mxu0 %v1087
    %1131 = vmatpush.bf16.msra.mxu0 %v1086
    %1132 = vmatmul.bf16.gmra.mxu0 %v1011
    %v1133 = vpop.f32.mrf.mxu0
    %v1134 = vadd.f32 %v1120, %v1133
    %v1135 = vpop.f32.mrf.mxu0
    %v1136 = vadd.f32 %v1122, %v1135
    %1137 = vdwg.mxu0
    %1140 = vrot.lane.b32.xlu0 %v1134, 3
    %v1141 = vpop.permute.xlu0 %1140
    %1142 = vrot.lane.b32.xlu0 %v1136, 3
    %v1143 = vpop.permute.xlu0 %1142
    %v1146 = vsel %vm248, %v215, %v255
    %v1147 = vsel %vm248, %v218, %v256
    %vm1148 = vcmask 23552
    %v1149 = vsel %vm1148, %v1146, %v1141
    %v1150 = vsel %vm1148, %v1147, %v1143
    %vm1151 = vcmask 31744
    %1152 = vst.msk [vmem:[%s16] sm:$0xff] %vm1151, %v1149
    %1153 = vst.msk [vmem:[%s16 + $0x8] sm:$0xff] %vm1151, %v1150
    // Predicated region
    $region74: #{tpu_custom_call.1} parent=1 // pred_check
      _
    $region75: #{tpu_custom_call.1} parent=1 // pred_check_branch
      %1155 = sbr.rel (0) target = $region77
    $region76: #{tpu_custom_call.1} parent=1 // pred_region
      _
    $region77: #{tpu_custom_call.1} parent=1 // pred_fallthru
      _
    // Predicated region
    $region78: #{tpu_custom_call.1} parent=1 // pred_check
      _
    $region79: #{tpu_custom_call.1} parent=1 // pred_check_branch
      %1157 = sbr.rel (0) target = $region81
    $region80: #{tpu_custom_call.1} parent=1 // pred_region
      _
    $region81: #{tpu_custom_call.1} parent=1 // pred_fallthru
      _
    %1158 = vsyncpa [#allocation4], 1
    %1159 = vsyncpa [#allocation6], 1

</llo_original>
